<compile_context>
chip_gen: v7x
topology: tpu7x:2x2x1
jax: 0.10.0
libtpu: 0.0.40
codegen_flags: <defaults>
</compile_context>

<pallas_src>
import jax
import jax.numpy as jnp
from jax.experimental import pallas as pl
from jax.experimental.pallas import tpu as pltpu

BETA = 0.001
NR_CLASSES = 19
_OUT_LANES = 128  # lane-dense output tile


def _make_dpl_kernel(pcbm: bool, batch: int, from_logits: bool):
    """Builds the kernel (static variant per pcbm / from_logits / batch)."""
    inv_b = 1.0 / float(batch)

    def kernel(ys_ref, lab_ref, *rest):
        if pcbm:
            mu0_ref, mu1_ref, lv0_ref, lv1_ref, out_ref = rest
        else:
            (out_ref,) = rest

        ys = ys_ref[...]                        # (B, C) probs or logits
        B, C = ys.shape
        labels = lab_ref[...]                   # (B, 1) int32

        # TODO(synk): no label-range guard; out-of-range labels give -inf
        # (PyTorch nll_loss would raise).
        col = jax.lax.broadcasted_iota(jnp.int32, (B, C), 1)
        is_label = col == labels                # (B, C) bool

        if from_logits:
            # Fused log-softmax gather: x[label] - logsumexp(x).
            m = jnp.max(ys, axis=1, keepdims=True)                     # (B, 1)
            lse = m + jnp.log(jnp.sum(jnp.exp(ys - m), axis=1, keepdims=True))
            x_lab = jnp.sum(jnp.where(is_label, ys, 0.0), axis=1, keepdims=True)
            logp = x_lab - lse                                         # (B, 1)
        else:
            # Gather BEFORE the log: B logs instead of B*C, no 0*log(0) NaN.
            p = jnp.sum(jnp.where(is_label, ys, 0.0), axis=1, keepdims=True)
            logp = jnp.log(p)                                          # (B, 1)

        nll = -jnp.sum(logp, axis=0, keepdims=True) * inv_b            # (1, 1)

        if pcbm:
            kl = jnp.zeros((1, 1), jnp.float32)
            for mu_ref, lv_ref in ((mu0_ref, lv0_ref), (mu1_ref, lv1_ref)):
                mu = mu_ref[...]                # (B, D)
                lv = lv_ref[...]                # (B, D)
                kl_elem = 1.0 + lv - mu * mu - jnp.exp(lv)
                kl = kl + (-0.5) * jnp.sum(
                    jnp.sum(kl_elem, axis=1, keepdims=True),
                    axis=0, keepdims=True)                             # (1, 1)
            total = nll + jnp.float32(BETA) * kl
        else:
            kl = jnp.zeros((1, 1), jnp.float32)
            total = nll

        # Pack [loss, y-loss, kl-div] into one lane-dense (1, 128) tile.
        lane = jax.lax.broadcasted_iota(jnp.int32, (1, out_ref.shape[1]), 1)
        packed = jnp.where(lane == 0, total,
                 jnp.where(lane == 1, nll,
                 jnp.where(lane == 2, kl, 0.0)))
        out_ref[...] = packed

    return kernel


def addmnist_dpl_loss(ys, labels, mus=None, logvars=None, pcbm=True,
                      from_logits=False):
    """Pallas implementation of ADDMNIST_DPL.forward.

    Args:
      ys: (B, nr_classes) float32 probabilities (out_dict['YS']), or raw
        logits when from_logits=True (log-softmax is then fused in-kernel).
      labels: (B,) int32 (out_dict['LABELS']).
      mus: tuple of two (B, D) float32 arrays (out_dict['MUS']).
      logvars: tuple of two (B, D) float32 arrays (out_dict['LOGVARS']).
      pcbm: whether the KL term is added (module's pcbm flag).
      from_logits: compute log p[label] = x[label] - logsumexp(x) in-kernel.

    Returns:
      (loss, losses_dict) mirroring the PyTorch module.
    """
    B, C = ys.shape
    labels2d = labels.reshape(B, 1).astype(jnp.int32)
    vmem = pl.BlockSpec(memory_space=pltpu.MemorySpace.VMEM)
    kernel = _make_dpl_kernel(pcbm, B, from_logits)

    if pcbm:
        # Four separate small VMEM inputs; their prologue DMAs overlap.
        inputs = (ys, labels2d, mus[0], mus[1], logvars[0], logvars[1])
        d = int(mus[0].shape[1] + mus[1].shape[1])
    else:
        inputs = (ys, labels2d)
        d = 0

    # Advisory cost estimate (exp only on logvar elements, log once per row).
    flops = 2 * B * C + 8
    transcendentals = B
    if from_logits:
        flops += 3 * B * C
        transcendentals += B * C
    if pcbm:
        flops += 6 * B * d + 8
        transcendentals += B * d
    bytes_accessed = 4 * (sum(int(x.size) for x in inputs) + _OUT_LANES)

    out = pl.pallas_call(
        kernel,
        out_shape=jax.ShapeDtypeStruct((1, _OUT_LANES), jnp.float32),
        in_specs=[vmem] * len(inputs),
        out_specs=vmem,
        cost_estimate=pl.CostEstimate(flops=int(flops),
                                      transcendentals=int(transcendentals),
                                      bytes_accessed=int(bytes_accessed)),
    )(*inputs)

    loss = out[0, 0]
    y_loss = out[0, 1]
    kl = out[0, 2]

    losses = {"y-loss": y_loss}
    if pcbm:
        losses["kl-div"] = kl
        return loss, losses
    # TODO(synk): generic injected base_loss is fixed to the ADDMNIST
    # cumulative NLL loss; without pcbm the KL term is dropped entirely.
    return y_loss, losses


def _reference(ys, labels, mus, logvars):
    log_p = jnp.log(ys[jnp.arange(ys.shape[0]), labels])
    nll = -jnp.mean(log_p)
    kl = 0.0
    for i in range(2):
        kl += -0.5 * jnp.sum(1.0 + logvars[i] - mus[i] ** 2 - jnp.exp(logvars[i]))
    return nll + BETA * kl, nll, kl


if __name__ == "__main__":
    key = jax.random.PRNGKey(0)
    k1, k2, k3, k4, k5, k6 = jax.random.split(key, 6)

    B, D = 8, 32
    logits = jax.random.normal(k1, (B, NR_CLASSES), dtype=jnp.float32)
    ys = jax.nn.softmax(logits, axis=-1)
    labels = jax.random.randint(k2, (B,), 0, NR_CLASSES, dtype=jnp.int32)
    mus = (jax.random.normal(k3, (B, D), dtype=jnp.float32),
           jax.random.normal(k4, (B, D), dtype=jnp.float32))
    logvars = (0.1 * jax.random.normal(k5, (B, D), dtype=jnp.float32),
               0.1 * jax.random.normal(k6, (B, D), dtype=jnp.float32))

    ref_loss, ref_nll, ref_kl = _reference(ys, labels, mus, logvars)

    # pcbm=True path, probability input (matches the PyTorch module exactly).
    loss, losses = addmnist_dpl_loss(ys, labels, mus, logvars, pcbm=True)
    jax.block_until_ready(loss)
    jax.block_until_ready(losses["kl-div"])
    assert jnp.allclose(loss, ref_loss, rtol=1e-5, atol=1e-5)
    assert jnp.allclose(losses["y-loss"], ref_nll, rtol=1e-5, atol=1e-5)
    assert jnp.allclose(losses["kl-div"], ref_kl, rtol=1e-5, atol=1e-5)

    # pcbm=False path: KL work (and its input DMAs) is skipped entirely.
    loss_nok, losses_nok = addmnist_dpl_loss(ys, labels, mus, logvars, pcbm=False)
    jax.block_until_ready(loss_nok)
    assert jnp.allclose(loss_nok, ref_nll, rtol=1e-5, atol=1e-5)
    assert "kl-div" not in losses_nok

    # from_logits path: log-softmax fused in-kernel, same numerical result.
    loss_lg, losses_lg = addmnist_dpl_loss(logits, labels, mus, logvars,
                                           pcbm=True, from_logits=True)
    jax.block_until_ready(loss_lg)
    assert jnp.allclose(loss_lg, ref_loss, rtol=1e-5, atol=1e-5)
    assert jnp.allclose(losses_lg["y-loss"], ref_nll, rtol=1e-5, atol=1e-5)
    assert jnp.allclose(losses_lg["kl-div"], ref_kl, rtol=1e-5, atol=1e-5)

    print("KERNEL_OK")
</pallas_src>

<mosaic_0001>
module attributes {stable_mosaic.version = 11 : i64} {
  func.func @kernel(%arg0: memref<8x19xf32, #tpu.memory_space<vmem>>, %arg1: memref<8x1xi32, #tpu.memory_space<vmem>>, %arg2: memref<8x32xf32, #tpu.memory_space<vmem>>, %arg3: memref<8x32xf32, #tpu.memory_space<vmem>>, %arg4: memref<8x32xf32, #tpu.memory_space<vmem>>, %arg5: memref<8x32xf32, #tpu.memory_space<vmem>>, %arg6: memref<1x128xf32, #tpu.memory_space<vmem>>) attributes {dimension_semantics = [], scalar_prefetch = 0 : i64, scratch_operands = 0 : i64, tpu.core_type = #tpu.core_type<tc>} {
    %c0 = arith.constant 0 : index
    %c0_0 = arith.constant 0 : index
    %0 = vector.load %arg0[%c0, %c0_0] : memref<8x19xf32, #tpu.memory_space<vmem>>, vector<8x19xf32>
    %c0_1 = arith.constant 0 : index
    %c0_2 = arith.constant 0 : index
    %1 = vector.load %arg1[%c0_1, %c0_2] : memref<8x1xi32, #tpu.memory_space<vmem>>, vector<8x1xi32>
    %2 = tpu.iota {dimensions = array<i32: 1>} : vector<8x19xi32>
    %3 = vector.broadcast %1 : vector<8x1xi32> to vector<8x19xi32>
    %4 = arith.cmpi eq, %2, %3 : vector<8x19xi32>
    %cst = arith.constant 0.000000e+00 : f32
    %5 = vector.broadcast %cst : f32 to vector<8x19xf32>
    %6 = arith.select %4, %0, %5 : vector<8x19xi1>, vector<8x19xf32>
    %cst_3 = arith.constant dense<0.000000e+00> : vector<8xf32>
    %7 = vector.multi_reduction <add>, %6, %cst_3 [1] : vector<8x19xf32> to vector<8xf32>
    %8 = vector.shape_cast %7 : vector<8xf32> to vector<8x1xf32>
    %9 = math.log %8 : vector<8x1xf32>
    %cst_4 = arith.constant dense<0.000000e+00> : vector<1xf32>
    %10 = vector.multi_reduction <add>, %9, %cst_4 [0] : vector<8x1xf32> to vector<1xf32>
    %11 = vector.shape_cast %10 : vector<1xf32> to vector<1x1xf32>
    %cst_5 = arith.constant 0.000000e+00 : f32
    %12 = vector.broadcast %cst_5 : f32 to vector<1x1xf32>
    %13 = arith.subf %12, %11 : vector<1x1xf32>
    %cst_6 = arith.constant 1.250000e-01 : f32
    %14 = vector.broadcast %cst_6 : f32 to vector<1x1xf32>
    %15 = arith.mulf %13, %14 : vector<1x1xf32>
    %cst_7 = arith.constant 0.000000e+00 : f32
    %16 = vector.broadcast %cst_7 : f32 to vector<1x1xf32>
    %c0_8 = arith.constant 0 : index
    %c0_9 = arith.constant 0 : index
    %17 = vector.load %arg2[%c0_8, %c0_9] : memref<8x32xf32, #tpu.memory_space<vmem>>, vector<8x32xf32>
    %c0_10 = arith.constant 0 : index
    %c0_11 = arith.constant 0 : index
    %18 = vector.load %arg4[%c0_10, %c0_11] : memref<8x32xf32, #tpu.memory_space<vmem>>, vector<8x32xf32>
    %cst_12 = arith.constant 1.000000e+00 : f32
    %19 = vector.broadcast %cst_12 : f32 to vector<8x32xf32>
    %20 = arith.addf %19, %18 : vector<8x32xf32>
    %21 = arith.mulf %17, %17 : vector<8x32xf32>
    %22 = arith.subf %20, %21 : vector<8x32xf32>
    %23 = math.exp %18 : vector<8x32xf32>
    %24 = arith.subf %22, %23 : vector<8x32xf32>
    %cst_13 = arith.constant dense<0.000000e+00> : vector<8xf32>
    %25 = vector.multi_reduction <add>, %24, %cst_13 [1] : vector<8x32xf32> to vector<8xf32>
    %26 = vector.shape_cast %25 : vector<8xf32> to vector<8x1xf32>
    %cst_14 = arith.constant dense<0.000000e+00> : vector<1xf32>
    %27 = vector.multi_reduction <add>, %26, %cst_14 [0] : vector<8x1xf32> to vector<1xf32>
    %28 = vector.shape_cast %27 : vector<1xf32> to vector<1x1xf32>
    %cst_15 = arith.constant -5.000000e-01 : f32
    %29 = vector.broadcast %cst_15 : f32 to vector<1x1xf32>
    %30 = arith.mulf %29, %28 : vector<1x1xf32>
    %31 = arith.addf %16, %30 : vector<1x1xf32>
    %c0_16 = arith.constant 0 : index
    %c0_17 = arith.constant 0 : index
    %32 = vector.load %arg3[%c0_16, %c0_17] : memref<8x32xf32, #tpu.memory_space<vmem>>, vector<8x32xf32>
    %c0_18 = arith.constant 0 : index
    %c0_19 = arith.constant 0 : index
    %33 = vector.load %arg5[%c0_18, %c0_19] : memref<8x32xf32, #tpu.memory_space<vmem>>, vector<8x32xf32>
    %cst_20 = arith.constant 1.000000e+00 : f32
    %34 = vector.broadcast %cst_20 : f32 to vector<8x32xf32>
    %35 = arith.addf %34, %33 : vector<8x32xf32>
    %36 = arith.mulf %32, %32 : vector<8x32xf32>
    %37 = arith.subf %35, %36 : vector<8x32xf32>
    %38 = math.exp %33 : vector<8x32xf32>
    %39 = arith.subf %37, %38 : vector<8x32xf32>
    %cst_21 = arith.constant dense<0.000000e+00> : vector<8xf32>
    %40 = vector.multi_reduction <add>, %39, %cst_21 [1] : vector<8x32xf32> to vector<8xf32>
    %41 = vector.shape_cast %40 : vector<8xf32> to vector<8x1xf32>
    %cst_22 = arith.constant dense<0.000000e+00> : vector<1xf32>
    %42 = vector.multi_reduction <add>, %41, %cst_22 [0] : vector<8x1xf32> to vector<1xf32>
    %43 = vector.shape_cast %42 : vector<1xf32> to vector<1x1xf32>
    %cst_23 = arith.constant -5.000000e-01 : f32
    %44 = vector.broadcast %cst_23 : f32 to vector<1x1xf32>
    %45 = arith.mulf %44, %43 : vector<1x1xf32>
    %46 = arith.addf %31, %45 : vector<1x1xf32>
    %cst_24 = arith.constant 1.000000e-03 : f32
    %47 = vector.broadcast %cst_24 : f32 to vector<1x1xf32>
    %48 = arith.mulf %47, %46 : vector<1x1xf32>
    %49 = arith.addf %15, %48 : vector<1x1xf32>
    %50 = tpu.iota {dimensions = array<i32: 1>} : vector<1x128xi32>
    %c0_i32 = arith.constant 0 : i32
    %51 = vector.broadcast %c0_i32 : i32 to vector<1x128xi32>
    %52 = arith.cmpi eq, %50, %51 : vector<1x128xi32>
    %c1_i32 = arith.constant 1 : i32
    %53 = vector.broadcast %c1_i32 : i32 to vector<1x128xi32>
    %54 = arith.cmpi eq, %50, %53 : vector<1x128xi32>
    %c2_i32 = arith.constant 2 : i32
    %55 = vector.broadcast %c2_i32 : i32 to vector<1x128xi32>
    %56 = arith.cmpi eq, %50, %55 : vector<1x128xi32>
    %cst_25 = arith.constant 0.000000e+00 : f32
    %57 = vector.shape_cast %46 : vector<1x1xf32> to vector<1x1xf32>
    %58 = vector.broadcast %57 : vector<1x1xf32> to vector<1x128xf32>
    %59 = vector.broadcast %cst_25 : f32 to vector<1x128xf32>
    %60 = arith.select %56, %58, %59 : vector<1x128xi1>, vector<1x128xf32>
    %61 = vector.shape_cast %15 : vector<1x1xf32> to vector<1x1xf32>
    %62 = vector.broadcast %61 : vector<1x1xf32> to vector<1x128xf32>
    %63 = arith.select %54, %62, %60 : vector<1x128xi1>, vector<1x128xf32>
    %64 = vector.shape_cast %49 : vector<1x1xf32> to vector<1x1xf32>
    %65 = vector.broadcast %64 : vector<1x1xf32> to vector<1x128xf32>
    %66 = arith.select %52, %65, %63 : vector<1x128xi1>, vector<1x128xf32>
    %c0_26 = arith.constant 0 : index
    %c0_27 = arith.constant 0 : index
    %67 = vector.load %arg6[%c0_26, %c0_27] : memref<1x128xf32, #tpu.memory_space<vmem>>, vector<1x128xf32>
    tpu.vector_store %arg6[%c0_26, %c0_27], %66 {strides = array<i32>} : memref<1x128xf32, #tpu.memory_space<vmem>>, vector<1x128xf32>,
    return
  }
}

</mosaic_0001>

<llo_original>
// kernel: tpu_custom_call.1
$region0: #{tpu_custom_call.1}
  #allocation0 [shape = 'u32[]', space=smem, size = 0x4, offset = 0x4, fixed_abs, tag = 'smem constant byte address 0x4 - core index']
  #allocation1 [shape = 'u32[144,128]{1,0:T(1,128)}', space=vmem, size = 0x12000, scoped, tag = 'internal scratch']
  %s0 = inlined_call_operand.vmem [shape: f32[8,19], index: 0, kind: input, shape index: {}]
  %s1 = inlined_call_operand.vmem [shape: s32[8,1], index: 1, kind: input, shape index: {}]
  %s2 = inlined_call_operand.vmem [shape: f32[8,32], index: 2, kind: input, shape index: {}]
  %s3 = inlined_call_operand.hbm [shape: f32[8,32], index: 3, kind: input, shape index: {}]
  %s4 = inlined_call_operand.vmem [shape: f32[8,32], index: 4, kind: input, shape index: {}]
  %s5 = inlined_call_operand.hbm [shape: f32[8,32], index: 5, kind: input, shape index: {}]
  %s6 = inlined_call_operand.hbm [shape: f32[1,128], index: 6, kind: output, shape index: {}]
  %s7 = sld [smem:[#allocation0]]
  $region42: #{tpu_custom_call.1} parent=0
    _
  %s9 = ssub.s32 1, %s7
  %s10 = scalar_select 0, %s9, %s7
  $region1: #{tpu_custom_call.1} parent=0
    #allocation2 [shape = 'u8[4096]{0}', space=vmem, size = 0x1000, scoped, tag = 'input window, operand 3, single buffered']
    #allocation3 [shape = 's32[1]{0}', space=sflag, size = 0x4, scoped, tag = 'scoped memory for tpu_custom_call.1']
    #allocation4 [shape = 's32[1]{0}', space=sflag, size = 0x4, scoped, tag = 'scoped memory for tpu_custom_call.1']
    #allocation5 [shape = 'u8[4096]{0}', space=vmem, size = 0x1000, scoped, tag = 'input window, operand 5, single buffered']
    #allocation6 [shape = 's32[1]{0}', space=sflag, size = 0x4, scoped, tag = 'scoped memory for tpu_custom_call.1']
    #allocation7 [shape = 'u8[512]{0}', space=vmem, size = 0x400, scoped, tag = 'output window, operand 0, single buffered']
    %11 = vsyncpa [#allocation3], 0
    %12 = vsyncpa [#allocation6], 0
    %13 = vsyncpa [#allocation4], 0
    // Predicated region
    $region2: #{tpu_custom_call.1} parent=1 // pred_check
      _
    $region3: #{tpu_custom_call.1} parent=1 // pred_check_branch
      %15 = sbr.rel (0) target = $region5
    $region4: #{tpu_custom_call.1} parent=1 // pred_region
      _
    $region5: #{tpu_custom_call.1} parent=1 // pred_fallthru
      _
    // Predicated region
    $region6: #{tpu_custom_call.1} parent=1 // pred_check
      _
    $region7: #{tpu_custom_call.1} parent=1 // pred_check_branch
      %17 = sbr.rel (0) target = $region9
    $region8: #{tpu_custom_call.1} parent=1 // pred_region
      _
    $region9: #{tpu_custom_call.1} parent=1 // pred_fallthru
      _
    // Predicated region
    $region10: #{tpu_custom_call.1} parent=1 // pred_check
      _
    $region11: #{tpu_custom_call.1} parent=1 // pred_check_branch
      %19 = sbr.rel (0) target = $region13
    $region12: #{tpu_custom_call.1} parent=1 // pred_region
      _
    $region13: #{tpu_custom_call.1} parent=1 // pred_fallthru
      _
    // Predicated region
    $region14: #{tpu_custom_call.1} parent=1 // pred_check
      _
    $region15: #{tpu_custom_call.1} parent=1 // pred_check_branch
      %21 = sbr.rel (0) target = $region17
    $region16: #{tpu_custom_call.1} parent=1 // pred_region
      %s23 = ssub.s32 128, 128
      %24 = vsyncadd [#allocation3], %s23
      %s26 = sshll.u32 [#allocation2], 4
      %s27 = int_to_ptr.vmem [resolvable:$true] %s26
      %29 = dma.hbm_to_vmem [thread:$0]  %s3, 128, %s27, [#allocation3]
    $region17: #{tpu_custom_call.1} parent=1 // pred_fallthru
      _
    // Predicated region
    $region18: #{tpu_custom_call.1} parent=1 // pred_check
      _
    $region19: #{tpu_custom_call.1} parent=1 // pred_check_branch
      %31 = sbr.rel (0) target = $region21
    $region20: #{tpu_custom_call.1} parent=1 // pred_region
      _
    $region21: #{tpu_custom_call.1} parent=1 // pred_fallthru
      _
    // Predicated region
    $region22: #{tpu_custom_call.1} parent=1 // pred_check
      _
    $region23: #{tpu_custom_call.1} parent=1 // pred_check_branch
      %33 = sbr.rel (0) target = $region25
    $region24: #{tpu_custom_call.1} parent=1 // pred_region
      %s35 = ssub.s32 128, 128
      %36 = vsyncadd [#allocation6], %s35
      %s38 = sshll.u32 [#allocation5], 4
      %s39 = int_to_ptr.vmem [resolvable:$true] %s38
      %41 = dma.hbm_to_vmem [thread:$0]  %s5, 128, %s39, [#allocation6]
    $region25: #{tpu_custom_call.1} parent=1 // pred_fallthru
      _
    // Predicated region
    $region26: #{tpu_custom_call.1} parent=1 // pred_check
      _
    $region27: #{tpu_custom_call.1} parent=1 // pred_check_branch
      %43 = sbr.rel (0) target = $region29
    $region28: #{tpu_custom_call.1} parent=1 // pred_region
      %44 = dma.done [#allocation3], 128
    $region29: #{tpu_custom_call.1} parent=1 // pred_fallthru
      _
    // Predicated region
    $region30: #{tpu_custom_call.1} parent=1 // pred_check
      _
    $region31: #{tpu_custom_call.1} parent=1 // pred_check_branch
      %46 = sbr.rel (0) target = $region33
    $region32: #{tpu_custom_call.1} parent=1 // pred_region
      %47 = dma.done [#allocation6], 128
    $region33: #{tpu_custom_call.1} parent=1 // pred_fallthru
      _
    %v48 = vld [vmem:[%s0] sm:$0xff]
    %v49 = vld [vmem:[%s1] sm:$0xff]
    %v50 = vlaneseq
    %v51 = vand.u32 %v50, 127
    %52 = vset.pattern.permute.xlu0 0
    %53 = vperm.xlu0 %52, %v49
    %v54 = vpop.permute.xlu0 %53
    %vm55 = vcmp.eq.s32.totalorder %v51, %v54
    %v56 = vsel %vm55, %v48, 0.0
    %vm57 = vcmask 154624
    %v58 = vsel %vm57, %v56, 0.0
    %59 = vadd.xlane.f32.xlu0 %v58
    %v60 = vpop.xlane.xlu0 %59
    %v61 = vlog2.pop %v60
    %v62 = vmul.f32 %v61, 0.6931472
    %v63 = vrot.slane %v62, 4
    %v64 = vadd.f32 %v62, %v63
    %v65 = vrot.slane %v64, 2
    %v66 = vadd.f32 %v64, %v65
    %v67 = vrot.slane %v66, 1
    %v68 = vadd.f32 %v66, %v67
    %v69 = vsub.f32 0.0, %v68
    %v70 = vmul.f32 %v69, 0.125
    %v71 = vld [vmem:[%s2] sm:$0xff]
    %v72 = vld [vmem:[%s4] sm:$0xff]
    %v73 = vadd.f32 %v72, 1.0
    %v74 = vmul.f32 %v71, %v71
    %v75 = vsub.f32 %v73, %v74
    %v76 = vmul.f32 %v72, 1.442695
    %v77 = vpow.pop %v76
    %v78 = vsub.f32 %v75, %v77
    %vm79 = vcmask 261120
    %v80 = vsel %vm79, %v78, 0.0
    %81 = vadd.xlane.f32.xlu0 %v80
    %v82 = vpop.xlane.xlu0 %81
    %v83 = vrot.slane %v82, 4
    %v84 = vadd.f32 %v82, %v83
    %v85 = vrot.slane %v84, 2
    %v86 = vadd.f32 %v84, %v85
    %v87 = vrot.slane %v86, 1
    %v88 = vadd.f32 %v86, %v87
    %v89 = vmul.f32 %v88, -0.5
    %v90 = vadd.f32 %v89, 0.0
    %v91 = vld [vmem:[#allocation2] sm:$0xff]
    %v92 = vld [vmem:[#allocation5] sm:$0xff]
    %v93 = vadd.f32 %v92, 1.0
    %v94 = vmul.f32 %v91, %v91
    %v95 = vsub.f32 %v93, %v94
    %v96 = vmul.f32 %v92, 1.442695
    %v97 = vpow.pop %v96
    %v98 = vsub.f32 %v95, %v97
    %v99 = vsel %vm79, %v98, 0.0
    %100 = vadd.xlane.f32.xlu0 %v99
    %v101 = vpop.xlane.xlu0 %100
    %v102 = vrot.slane %v101, 4
    %v103 = vadd.f32 %v101, %v102
    %v104 = vrot.slane %v103, 2
    %v105 = vadd.f32 %v103, %v104
    %v106 = vrot.slane %v105, 1
    %v107 = vadd.f32 %v105, %v106
    %v108 = vmul.f32 %v107, -0.5
    %v109 = vadd.f32 %v90, %v108
    %v110 = vmul.f32 %v109, 0.001
    %v111 = vadd.f32 %v70, %v110
    %vm112 = vcmp.eq.s32.totalorder %v51, 0
    %vm113 = vcmp.eq.s32.totalorder %v51, 1
    %vm114 = vcmp.eq.s32.totalorder %v51, 2
    %v115 = vsel %vm114, %v109, 0.0
    %v116 = vsel %vm113, %v70, %v115
    %v117 = vsel %vm112, %v111, %v116
    %118 = vst [vmem:[#allocation7] sm:$0x1] %v117
    // Predicated region
    $region34: #{tpu_custom_call.1} parent=1 // pred_check
      _
    $region35: #{tpu_custom_call.1} parent=1 // pred_check_branch
      %120 = sbr.rel (0) target = $region37
    $region36: #{tpu_custom_call.1} parent=1 // pred_region
      %s122 = ssub.s32 16, 16
      %123 = vsyncadd [#allocation4], %s122
      %s125 = sshll.u32 [#allocation7], 4
      %s126 = int_to_ptr.vmem [resolvable:$true] %s125
      %128 = dma.vmem_to_hbm [thread:$0]  %s126, 16, %s6, [#allocation4]
    $region37: #{tpu_custom_call.1} parent=1 // pred_fallthru
      _
    // Predicated region
    $region38: #{tpu_custom_call.1} parent=1 // pred_check
      _
    $region39: #{tpu_custom_call.1} parent=1 // pred_check_branch
      %130 = sbr.rel (0) target = $region41
    $region40: #{tpu_custom_call.1} parent=1 // pred_region
      %131 = dma.done [#allocation4], 16
    $region41: #{tpu_custom_call.1} parent=1 // pred_fallthru
      _
    %132 = vsyncpa [#allocation3], 1
    %133 = vsyncpa [#allocation6], 1
    %134 = vsyncpa [#allocation4], 1

</llo_original>
